<compile_context>
chip_gen: v6e
topology: v6e:2x2x1
jax: 0.10.0
libtpu: 0.0.40
codegen_flags: <defaults>
</compile_context>

<pallas_src>
import math

import jax
import jax.numpy as jnp
from jax import lax
from jax.experimental import pallas as pl
from jax.experimental.pallas import tpu as pltpu


# -----------------------------------------------------------------------------
# Pallas kernel
# -----------------------------------------------------------------------------
def _ein_linear_kernel(x_ref, w_ref, o_ref):
    # x_ref: (TILE_B, E, I)   w_ref: (E, I, O_pad)   o_ref: (TILE_B, E, O_pad)
    n_models = w_ref.shape[0]
    # E is small (transition_dim); unrolled Python loop => static slices, full
    # LLO scheduler visibility, one MXU matmul per model per step.
    for e in range(n_models):
        y = lax.dot_general(
            x_ref[:, e, :],            # (TILE_B, I)
            w_ref[e],                  # (I, O_pad)   canonical [K, N] feed
            dimension_numbers=(((1,), (0,)), ((), ())),
            preferred_element_type=jnp.float32,
        )
        o_ref[:, e, :] = y.astype(o_ref.dtype)


# -----------------------------------------------------------------------------
# Tile-size heuristic (VMEM-budget driven, generation-safe)
# -----------------------------------------------------------------------------
def _auto_tile_b(B, E, I, O_pad, x_bytes, w_bytes, out_bytes, vmem_budget):
    rup = lambda v, m: ((v + m - 1) // m) * m
    # Per-batch-row VMEM footprint of one block (sublane/lane padded).
    per_row = rup(E, 8) * (rup(I, 128) * x_bytes + O_pad * out_bytes)
    # Resident weight, conservatively counted as double-buffered.
    weight_bytes = 2 * E * rup(I, 8) * O_pad * w_bytes
    avail = max(vmem_budget - weight_bytes, 16 * per_row)
    tile = int(avail // (2 * per_row))          # 2x: double-buffered streams
    tile = max(8, min(512, tile))               # >=256 feeds v6e/v7x MXU when possible
    tile = min(tile, rup(B, 8))
    if B < 8:
        return B
    return max(8, (tile // 8) * 8)


# -----------------------------------------------------------------------------
# Wrapper
# -----------------------------------------------------------------------------
def ein_linear(x, weight, *, tile_b=None, compute_dtype=None,
               vmem_limit_bytes=48 * 1024 * 1024):
    """EinLinear forward.

    x:      (B, E, I)   -- 'bei'
    weight: (E, O, I)   -- 'eoi'
    returns (B, E, O)   -- 'beo'  (== einsum('eoi,bei->beo', weight, x))
    """
    B, E, I = x.shape
    E_w, O, I_w = weight.shape
    assert E == E_w and I == I_w, "shape mismatch between input and weight"

    out_dtype = x.dtype
    cdt = x.dtype if compute_dtype is None else jnp.dtype(compute_dtype)
    x_bytes = jnp.dtype(cdt).itemsize
    w_bytes = jnp.dtype(cdt).itemsize
    out_bytes = jnp.dtype(out_dtype).itemsize

    # Lane-dense output: pad O up to the next multiple of 128 (padded weight
    # columns are zero; sliced off after the call).
    O_pad = ((O + 127) // 128) * 128

    # One-time weight re-layout: (E, O, I) -> (E, I, O_pad).  Tiny vs. the
    # activation streams and removes any per-step transposed-weight MXU feed.
    w_t = jnp.swapaxes(weight, 1, 2)                      # (E, I, O)
    if O_pad != O:
        w_t = jnp.pad(w_t, ((0, 0), (0, 0), (0, O_pad - O)))
    w_t = w_t.astype(cdt)
    x_c = x.astype(cdt)

    if tile_b is None:
        # Budget below the scoped limit so the pipeline never turns serial,
        # safe on v7x's 64 MiB physical VMEM as well as v5e/v6e.
        tile_b = _auto_tile_b(B, E, I, O_pad, x_bytes, w_bytes, out_bytes,
                              vmem_budget=vmem_limit_bytes - (8 << 20))
    tile_b = max(1, min(tile_b, B))

    num_b_tiles = pl.cdiv(B, tile_b)

    flops = 2 * B * E * O_pad * I
    bytes_accessed = (B * E * I * x_bytes
                      + E * I * O_pad * w_bytes
                      + B * E * O_pad * out_bytes)

    out = pl.pallas_call(
        _ein_linear_kernel,
        out_shape=jax.ShapeDtypeStruct((B, E, O_pad), out_dtype),
        grid=(num_b_tiles,),
        in_specs=[
            # Contiguous activation slab straight from (B, E, I): no transpose.
            pl.BlockSpec((tile_b, E, I), lambda b: (b, 0, 0)),
            # Full weight, constant block index -> DMA'd once, VMEM-resident.
            pl.BlockSpec((E, I, O_pad), lambda b: (0, 0, 0)),
        ],
        out_specs=pl.BlockSpec((tile_b, E, O_pad), lambda b: (b, 0, 0)),
        compiler_params=pltpu.CompilerParams(
            dimension_semantics=("parallel",),
            vmem_limit_bytes=vmem_limit_bytes),
        cost_estimate=pl.CostEstimate(
            flops=flops, transcendentals=0, bytes_accessed=bytes_accessed),
    )(x_c, w_t)

    if O_pad != O:
        out = out[..., :O]
    return out


# -----------------------------------------------------------------------------
# Pure-JAX reference
# -----------------------------------------------------------------------------
def reference(x, weight):
    return jnp.einsum("eoi,bei->beo", weight, x,
                      precision=jax.lax.Precision.HIGHEST)


# -----------------------------------------------------------------------------
# Main
# -----------------------------------------------------------------------------
if __name__ == "__main__":
    # Small config consistent with the module's usage in BooT:
    #   n_models = transition_dim, in_features = n_embd, out_features ~ vocab+1
    n_models = 4           # E
    in_features = 32       # I (n_embd)
    out_features = 100     # O (vocab+1 style; NOT a multiple of 128 -> exercises padding)
    batch = 48             # B (flattened batch*seq rows)

    key = jax.random.PRNGKey(0)
    kw, kx = jax.random.split(key)

    # kaiming_uniform_(a=sqrt(5)) on an (O, I) matrix => bound = 1/sqrt(I)
    bound = 1.0 / math.sqrt(in_features)
    weight = jax.random.uniform(
        kw, (n_models, out_features, in_features), jnp.float32, -bound, bound)
    x = jax.random.normal(kx, (batch, n_models, in_features), jnp.float32)

    ref = reference(x, weight)

    # f32 path (module-exact numerics); grid = 3 B-tiles, weight resident.
    out = jax.block_until_ready(ein_linear(x, weight, tile_b=16))
    assert out.shape == (batch, n_models, out_features)
    max_err = jnp.max(jnp.abs(out - ref))
    assert jnp.allclose(out, ref, atol=1e-4, rtol=1e-4), (
        f"f32 path max abs diff = {max_err}")

    # bf16-streamed path (f32 MXU accumulation) -- the mem-bound fast path.
    out_bf = jax.block_until_ready(
        ein_linear(x, weight, tile_b=16, compute_dtype=jnp.bfloat16))
    max_err_bf = jnp.max(jnp.abs(out_bf - ref))
    assert jnp.allclose(out_bf, ref, atol=5e-2, rtol=5e-2), (
        f"bf16 path max abs diff = {max_err_bf}")

    print("KERNEL_OK")
</pallas_src>

<mosaic_0001>
module attributes {stable_mosaic.version = 11 : i64} {
  func.func @_ein_linear_kernel(%arg0: i32, %arg1: memref<16x4x32xf32, #tpu.memory_space<vmem>>, %arg2: memref<4x32x128xf32, #tpu.memory_space<vmem>>, %arg3: memref<16x4x128xf32, #tpu.memory_space<vmem>>) attributes {dimension_semantics = [#tpu.dimension_semantics<parallel>], iteration_bounds = array<i64: 3>, scalar_prefetch = 0 : i64, scratch_operands = 0 : i64, tpu.core_type = #tpu.core_type<tc>, window_params = [{transform_indices = @transform_0, window_bounds = array<i64: 16, 4, 32>}, {pipeline_mode = #tpu.pipeline_mode<synchronous>, transform_indices = @transform_1, window_bounds = array<i64: 4, 32, 128>}, {transform_indices = @transform_2, window_bounds = array<i64: 16, 4, 128>}]} {
    %c0 = arith.constant 0 : index
    %c0_0 = arith.constant 0 : index
    %c0_1 = arith.constant 0 : index
    %0 = vector.load %arg1[%c0, %c0_0, %c0_1] : memref<16x4x32xf32, #tpu.memory_space<vmem>>, vector<16x1x32xf32>
    %1 = vector.shape_cast %0 : vector<16x1x32xf32> to vector<16x32xf32>
    %c0_2 = arith.constant 0 : index
    %c0_3 = arith.constant 0 : index
    %c0_4 = arith.constant 0 : index
    %2 = vector.load %arg2[%c0_2, %c0_3, %c0_4] : memref<4x32x128xf32, #tpu.memory_space<vmem>>, vector<1x32x128xf32>
    %3 = vector.shape_cast %2 : vector<1x32x128xf32> to vector<32x128xf32>
    %cst = arith.constant dense<0.000000e+00> : vector<16x128xf32>
    %4 = tpu.matmul %1, %3, %cst {dimension_numbers = #tpu.dot_dimension_numbers<[1], [0], [0], [1], [0, 0, 1, 1], [], []>} : vector<16x32xf32>, vector<32x128xf32>, vector<16x128xf32> -> vector<16x128xf32>
    %c0_5 = arith.constant 0 : index
    %c0_6 = arith.constant 0 : index
    %c0_7 = arith.constant 0 : index
    %5 = vector.load %arg3[%c0_5, %c0_6, %c0_7] : memref<16x4x128xf32, #tpu.memory_space<vmem>>, vector<16x1x128xf32>
    %6 = vector.shape_cast %5 : vector<16x1x128xf32> to vector<16x128xf32>
    %7 = vector.shape_cast %4 : vector<16x128xf32> to vector<16x1x128xf32>
    tpu.vector_store %arg3[%c0_5, %c0_6, %c0_7], %7 {strides = array<i32>} : memref<16x4x128xf32, #tpu.memory_space<vmem>>, vector<16x1x128xf32>,
    %c0_8 = arith.constant 0 : index
    %c1 = arith.constant 1 : index
    %c0_9 = arith.constant 0 : index
    %8 = vector.load %arg1[%c0_8, %c1, %c0_9] : memref<16x4x32xf32, #tpu.memory_space<vmem>>, vector<16x1x32xf32>
    %9 = vector.shape_cast %8 : vector<16x1x32xf32> to vector<16x32xf32>
    %c1_10 = arith.constant 1 : index
    %c0_11 = arith.constant 0 : index
    %c0_12 = arith.constant 0 : index
    %10 = vector.load %arg2[%c1_10, %c0_11, %c0_12] : memref<4x32x128xf32, #tpu.memory_space<vmem>>, vector<1x32x128xf32>
    %11 = vector.shape_cast %10 : vector<1x32x128xf32> to vector<32x128xf32>
    %cst_13 = arith.constant dense<0.000000e+00> : vector<16x128xf32>
    %12 = tpu.matmul %9, %11, %cst_13 {dimension_numbers = #tpu.dot_dimension_numbers<[1], [0], [0], [1], [0, 0, 1, 1], [], []>} : vector<16x32xf32>, vector<32x128xf32>, vector<16x128xf32> -> vector<16x128xf32>
    %c0_14 = arith.constant 0 : index
    %c1_15 = arith.constant 1 : index
    %c0_16 = arith.constant 0 : index
    %13 = vector.load %arg3[%c0_14, %c1_15, %c0_16] : memref<16x4x128xf32, #tpu.memory_space<vmem>>, vector<16x1x128xf32>
    %14 = vector.shape_cast %13 : vector<16x1x128xf32> to vector<16x128xf32>
    %15 = vector.shape_cast %12 : vector<16x128xf32> to vector<16x1x128xf32>
    tpu.vector_store %arg3[%c0_14, %c1_15, %c0_16], %15 {strides = array<i32>} : memref<16x4x128xf32, #tpu.memory_space<vmem>>, vector<16x1x128xf32>,
    %c0_17 = arith.constant 0 : index
    %c2 = arith.constant 2 : index
    %c0_18 = arith.constant 0 : index
    %16 = vector.load %arg1[%c0_17, %c2, %c0_18] : memref<16x4x32xf32, #tpu.memory_space<vmem>>, vector<16x1x32xf32>
    %17 = vector.shape_cast %16 : vector<16x1x32xf32> to vector<16x32xf32>
    %c2_19 = arith.constant 2 : index
    %c0_20 = arith.constant 0 : index
    %c0_21 = arith.constant 0 : index
    %18 = vector.load %arg2[%c2_19, %c0_20, %c0_21] : memref<4x32x128xf32, #tpu.memory_space<vmem>>, vector<1x32x128xf32>
    %19 = vector.shape_cast %18 : vector<1x32x128xf32> to vector<32x128xf32>
    %cst_22 = arith.constant dense<0.000000e+00> : vector<16x128xf32>
    %20 = tpu.matmul %17, %19, %cst_22 {dimension_numbers = #tpu.dot_dimension_numbers<[1], [0], [0], [1], [0, 0, 1, 1], [], []>} : vector<16x32xf32>, vector<32x128xf32>, vector<16x128xf32> -> vector<16x128xf32>
    %c0_23 = arith.constant 0 : index
    %c2_24 = arith.constant 2 : index
    %c0_25 = arith.constant 0 : index
    %21 = vector.load %arg3[%c0_23, %c2_24, %c0_25] : memref<16x4x128xf32, #tpu.memory_space<vmem>>, vector<16x1x128xf32>
    %22 = vector.shape_cast %21 : vector<16x1x128xf32> to vector<16x128xf32>
    %23 = vector.shape_cast %20 : vector<16x128xf32> to vector<16x1x128xf32>
    tpu.vector_store %arg3[%c0_23, %c2_24, %c0_25], %23 {strides = array<i32>} : memref<16x4x128xf32, #tpu.memory_space<vmem>>, vector<16x1x128xf32>,
    %c0_26 = arith.constant 0 : index
    %c3 = arith.constant 3 : index
    %c0_27 = arith.constant 0 : index
    %24 = vector.load %arg1[%c0_26, %c3, %c0_27] : memref<16x4x32xf32, #tpu.memory_space<vmem>>, vector<16x1x32xf32>
    %25 = vector.shape_cast %24 : vector<16x1x32xf32> to vector<16x32xf32>
    %c3_28 = arith.constant 3 : index
    %c0_29 = arith.constant 0 : index
    %c0_30 = arith.constant 0 : index
    %26 = vector.load %arg2[%c3_28, %c0_29, %c0_30] : memref<4x32x128xf32, #tpu.memory_space<vmem>>, vector<1x32x128xf32>
    %27 = vector.shape_cast %26 : vector<1x32x128xf32> to vector<32x128xf32>
    %cst_31 = arith.constant dense<0.000000e+00> : vector<16x128xf32>
    %28 = tpu.matmul %25, %27, %cst_31 {dimension_numbers = #tpu.dot_dimension_numbers<[1], [0], [0], [1], [0, 0, 1, 1], [], []>} : vector<16x32xf32>, vector<32x128xf32>, vector<16x128xf32> -> vector<16x128xf32>
    %c0_32 = arith.constant 0 : index
    %c3_33 = arith.constant 3 : index
    %c0_34 = arith.constant 0 : index
    %29 = vector.load %arg3[%c0_32, %c3_33, %c0_34] : memref<16x4x128xf32, #tpu.memory_space<vmem>>, vector<16x1x128xf32>
    %30 = vector.shape_cast %29 : vector<16x1x128xf32> to vector<16x128xf32>
    %31 = vector.shape_cast %28 : vector<16x128xf32> to vector<16x1x128xf32>
    tpu.vector_store %arg3[%c0_32, %c3_33, %c0_34], %31 {strides = array<i32>} : memref<16x4x128xf32, #tpu.memory_space<vmem>>, vector<16x1x128xf32>,
    return
  }
  func.func @transform_0(%arg0: i32) -> (i32, i32, i32) {
    %c0_i32 = arith.constant 0 : i32
    %c0_i32_0 = arith.constant 0 : i32
    %c0_i32_1 = arith.constant 0 : i32
    return %arg0, %c0_i32, %c0_i32_0 : i32, i32, i32
  }
  func.func @transform_1(%arg0: i32) -> (i32, i32, i32) {
    %c0_i32 = arith.constant 0 : i32
    %c0_i32_0 = arith.constant 0 : i32
    %c0_i32_1 = arith.constant 0 : i32
    %c0_i32_2 = arith.constant 0 : i32
    return %c0_i32, %c0_i32_0, %c0_i32_1 : i32, i32, i32
  }
  func.func @transform_2(%arg0: i32) -> (i32, i32, i32) {
    %c0_i32 = arith.constant 0 : i32
    %c0_i32_0 = arith.constant 0 : i32
    %c0_i32_1 = arith.constant 0 : i32
    return %arg0, %c0_i32, %c0_i32_0 : i32, i32, i32
  }
}

</mosaic_0001>

<llo_original>
// kernel: tpu_custom_call.1
$region0: #{tpu_custom_call.1}
  #allocation0 [shape = 'u32[]', space=smem, size = 0x4, offset = 0x4, fixed_abs, tag = 'smem constant byte address 0x4 - core index']
  #allocation1 [shape = 'u32[144,128]{1,0:T(1,128)}', space=vmem, size = 0x12000, scoped, tag = 'internal scratch']
  %s0 = inlined_call_operand.vmem [shape: f32[48,4,32], index: 0, kind: input, shape index: {}]
  %s1 = inlined_call_operand.vmem [shape: f32[4,32,128], index: 1, kind: input, shape index: {}]
  %s2 = inlined_call_operand.hbm [shape: f32[48,4,128], index: 2, kind: output, shape index: {}]
  %s3 = sld [smem:[#allocation0]]
  $region41: #{tpu_custom_call.1} parent=0
    _
  %s5 = ssub.s32 1, %s3
  %s6 = scalar_select 0, %s5, %s3
  $region1: #{tpu_custom_call.1} parent=0
    #allocation2 [shape = 'u8[65536]{0}', space=vmem, size = 0x10000, scoped, tag = 'output window, operand 0']
    #allocation3 [shape = 's32[2]{0}', space=sflag, size = 0x8, scoped, tag = 'scoped memory for tpu_custom_call.1']
    %7 = vsyncpa [#allocation3], 0
    %s8 = scalar_lea.sflag [#allocation3], 1
    %9 = vsyncpa %s8, 0
    loop: start=0, step=1, limit=5
    $region2: #{tpu_custom_call.1} parent=1 // loop_pre_header
      _
    $region3: #{tpu_custom_call.1} parent=1 // loop_header
      %s11 = sphi 0, %s15
      %p12 = scmp.ge.s32.totalorder %s11, 5
      %s21 = sphi 0, %s23
      %s24 = sphi 0, %s21
      %s25 = sphi 0, %s24
      %s41 = sphi 0, %s25
      %s45 = sphi 0, %s45
      %s47 = sphi 0, %s45
      %s48 = sphi 0, %s47
      %s62 = sphi 0, %s48
      %s68 = sphi 0, %s70
      %s71 = sphi 0, %s68
      %s72 = sphi 0, %s71
      %s88 = sphi 0, %s72
    $region4: #{tpu_custom_call.1} parent=1 // loop_header_branch
      %14 = sbr.rel (%p12) target = $region8
    $region5: #{tpu_custom_call.1} parent=1 // loop_body
      %s16 = ssub.s32 %s11, 1
      %s17 = ssub.s32 %s11, 2
      %s18 = sadd.s32 %s11, 1
      %s19 = ssub.s32 %s11, %s18
      %p20 = scmp.eq.s32.totalorder %s19, 0
      %s22 = sadd.s32 %s21, 1
      %s23 = scalar_select %p20, %s21, %s22
      %p26 = pneg %p20
      %p27 = scmp.eq.s32.totalorder %s11, 2
      %p28 = por %p26, %p27
      %p29 = scmp.ne.s32.totalorder %s21, %s24
      %p30 = scmp.eq.s32.totalorder %s11, 0
      %p31 = por %p29, %p30
      %p32 = scmp.ne.s32.totalorder %s21, %s24
      %p33 = scmp.eq.s32.totalorder %s16, 2
      %p34 = por %p32, %p33
      %p35 = scmp.ne.s32.totalorder %s24, %s25
      %p36 = scmp.eq.s32.totalorder %s16, 0
      %p37 = por %p35, %p36
      %p38 = scmp.ne.s32.totalorder %s24, %s25
      %p39 = scmp.eq.s32.totalorder %s17, 2
      %p40 = por %p38, %p39
      %p42 = scmp.ne.s32.totalorder %s25, %s41
      %p43 = scmp.eq.s32.totalorder %s17, 0
      %p44 = por %p42, %p43
      %s46 = sadd.s32 %s45, 1
      %p49 = scmp.eq.s32.totalorder %s11, 2
      %p50 = scmp.ne.s32.totalorder %s45, %s47
      %p51 = scmp.eq.s32.totalorder %s11, 0
      %p52 = por %p50, %p51
      %p53 = scmp.ne.s32.totalorder %s45, %s47
      %p54 = scmp.eq.s32.totalorder %s16, 2
      %p55 = por %p53, %p54
      %p56 = scmp.ne.s32.totalorder %s47, %s48
      %p57 = scmp.eq.s32.totalorder %s16, 0
      %p58 = por %p56, %p57
      %p59 = scmp.ne.s32.totalorder %s47, %s48
      %p60 = scmp.eq.s32.totalorder %s17, 2
      %p61 = por %p59, %p60
      %p63 = scmp.ne.s32.totalorder %s48, %s62
      %p64 = scmp.eq.s32.totalorder %s17, 0
      %p65 = por %p63, %p64
      %s66 = ssub.s32 %s11, %s18
      %p67 = scmp.eq.s32.totalorder %s66, 0
      %s69 = sadd.s32 %s68, 1
      %s70 = scalar_select %p67, %s68, %s69
      %p73 = pneg %p67
      %p74 = scmp.eq.s32.totalorder %s11, 2
      %p75 = por %p73, %p74
      %p76 = scmp.ne.s32.totalorder %s68, %s71
      %p77 = scmp.eq.s32.totalorder %s11, 0
      %p78 = por %p76, %p77
      %p79 = scmp.ne.s32.totalorder %s68, %s71
      %p80 = scmp.eq.s32.totalorder %s16, 2
      %p81 = por %p79, %p80
      %p82 = scmp.ne.s32.totalorder %s71, %s72
      %p83 = scmp.eq.s32.totalorder %s16, 0
      %p84 = por %p82, %p83
      %p85 = scmp.ne.s32.totalorder %s71, %s72
      %p86 = scmp.eq.s32.totalorder %s17, 2
      %p87 = por %p85, %p86
      %p89 = scmp.ne.s32.totalorder %s72, %s88
      %p90 = scmp.eq.s32.totalorder %s17, 0
      %p91 = por %p89, %p90
      %p92 = scmp.le.s32.totalorder 1, %s11
      %p93 = scmp.lt.s32.totalorder %s11, 4
      %p94 = pnand %p92, %p93
      %p95 = pneg %p94
      // Predicated region
      $region9: #{tpu_custom_call.1} parent=5 // pred_check
        _
      $region10: #{tpu_custom_call.1} parent=5 // pred_check_branch
        %97 = sbr.rel (%p94) target = $region12
      $region11: #{tpu_custom_call.1} parent=5 // pred_region
        %s98 = ssub.s32 %s11, 1
        // Predicated region
        $region13: #{tpu_custom_call.1} parent=11 // pred_check
          %p99 = pneg %p58
        $region14: #{tpu_custom_call.1} parent=11 // pred_check_branch
          %101 = sbr.rel (%p99) target = $region16
        $region15: #{tpu_custom_call.1} parent=11 // pred_region
          _
        $region16: #{tpu_custom_call.1} parent=11 // pred_fallthru
          _
      $region12: #{tpu_custom_call.1} parent=5 // pred_fallthru
        _
      %p102 = scmp.lt.s32.totalorder %s11, 3
      // Predicated region
      $region17: #{tpu_custom_call.1} parent=5 // pred_check
        %p103 = pneg %p102
      $region18: #{tpu_custom_call.1} parent=5 // pred_check_branch
        %105 = sbr.rel (%p103) target = $region20
      $region19: #{tpu_custom_call.1} parent=5 // pred_region
        // Predicated region
        $region21: #{tpu_custom_call.1} parent=19 // pred_check
          %p106 = pneg %p31
        $region22: #{tpu_custom_call.1} parent=19 // pred_check_branch
          %108 = sbr.rel (%p106) target = $region24
        $region23: #{tpu_custom_call.1} parent=19 // pred_region
          %s109 = smul.u32 16, %s11
          %p110 = scmp.lt.s32.totalorder %s109, 47
          %s111 = scalar_select %p110, %s109, 47
          %s112 = smul.addr %s111, 4
          %s113 = scalar_lea.vmem %s0, %s112
          %s114 = smul.u32 16, %s11
        $region24: #{tpu_custom_call.1} parent=19 // pred_fallthru
          _
      $region20: #{tpu_custom_call.1} parent=5 // pred_fallthru
        _
      %p115 = scmp.le.s32.totalorder 1, %s11
      %p116 = scmp.lt.s32.totalorder %s11, 4
      %p117 = pnand %p115, %p116
      %p118 = pneg %p117
      // Predicated region
      $region25: #{tpu_custom_call.1} parent=5 // pred_check
        _
      $region26: #{tpu_custom_call.1} parent=5 // pred_check_branch
        %120 = sbr.rel (%p117) target = $region28
      $region27: #{tpu_custom_call.1} parent=5 // pred_region
        %s121 = ssub.s32 %s11, 1
        %s122 = smul.u32 16, %s16
        %p123 = scmp.lt.s32.totalorder %s122, 47
        %s124 = scalar_select %p123, %s122, 47
        %s125 = smul.addr %s124, 4
        %s126 = scalar_lea.vmem %s0, %s125
        %p127 = pneg %p37
        %p128 = pneg %p34
        %p129 = pneg %p58
        %p130 = pneg %p55
        %p131 = pneg %p84
        %p132 = pneg %p81
        %s133 = sand.u32 %s71, 1
        %s134 = scalar_lea.sflag [#allocation3], %s133
        %s135 = sand.u32 %s71, 1
        %s136 = smul.addr %s135, 64
        %s137 = scalar_lea.vmem [#allocation2], %s136
        %s138 = smul.u32 16, %s16
        %p139 = scmp.lt.s32.totalorder %s138, 47
        %s140 = scalar_select %p139, %s138, 47
        %s141 = smul.addr %s140, 4
        %s142 = scalar_lea.vmem %s0, %s141
        %s143 = smul.u32 16, %s16
        %s144 = smul.u32 16, %s16
        %v145 = vld [vmem:[%s142] sm:$0x1]
        %v146 = vld [vmem:[%s142 + $0x4] sm:$0x1]
        %v147 = vld [vmem:[%s142 + $0x8] sm:$0x1]
        %v148 = vld [vmem:[%s142 + $0xc] sm:$0x1]
        %v149 = vld [vmem:[%s142 + $0x10] sm:$0x1]
        %v150 = vld [vmem:[%s142 + $0x14] sm:$0x1]
        %v151 = vld [vmem:[%s142 + $0x18] sm:$0x1]
        %v152 = vld [vmem:[%s142 + $0x1c] sm:$0x1]
        %v153 = vld [vmem:[%s142 + $0x20] sm:$0x1]
        %v154 = vld [vmem:[%s142 + $0x24] sm:$0x1]
        %v155 = vld [vmem:[%s142 + $0x28] sm:$0x1]
        %v156 = vld [vmem:[%s142 + $0x2c] sm:$0x1]
        %v157 = vld [vmem:[%s142 + $0x30] sm:$0x1]
        %v158 = vld [vmem:[%s142 + $0x34] sm:$0x1]
        %v159 = vld [vmem:[%s142 + $0x38] sm:$0x1]
        %v160 = vld [vmem:[%s142 + $0x3c] sm:$0x1]
        %v161 = vld [vmem:[%s1] sm:$0xff]
        %v162 = vld [vmem:[%s1 + $0x8] sm:$0xff]
        %v163 = vld [vmem:[%s1 + $0x10] sm:$0xff]
        %v164 = vld [vmem:[%s1 + $0x18] sm:$0xff]
        %v181 = vrot.slane %v146, 7
        %vm182 = vcmask 1041409
        %v183 = vsel %vm182, %v181, %v145
        %v184 = vrot.slane %v147, 6
        %vm185 = vcmask 1042434
        %v186 = vsel %vm185, %v184, %v183
        %v187 = vrot.slane %v148, 5
        %vm188 = vcmask 1043459
        %v189 = vsel %vm188, %v187, %v186
        %v190 = vrot.slane %v149, 4
        %vm191 = vcmask 1044484
        %v192 = vsel %vm191, %v190, %v189
        %v193 = vrot.slane %v150, 3
        %vm194 = vcmask 1045509
        %v195 = vsel %vm194, %v193, %v192
        %v196 = vrot.slane %v151, 2
        %vm197 = vcmask 1046534
        %v198 = vsel %vm197, %v196, %v195
        %v199 = vrot.slane %v152, 1
        %vm200 = vcmask 1047559
        %v201 = vsel %vm200, %v199, %v198
        %v202 = vrot.slane %v154, 7
        %v203 = vsel %vm182, %v202, %v153
        %v204 = vrot.slane %v155, 6
        %v205 = vsel %vm185, %v204, %v203
        %v206 = vrot.slane %v156, 5
        %v207 = vsel %vm188, %v206, %v205
        %v208 = vrot.slane %v157, 4
        %v209 = vsel %vm191, %v208, %v207
        %v210 = vrot.slane %v158, 3
        %v211 = vsel %vm194, %v210, %v209
        %v212 = vrot.slane %v159, 2
        %v213 = vsel %vm197, %v212, %v211
        %v214 = vrot.slane %v160, 1
        %v215 = vsel %vm200, %v214, %v213
        %vm216 = vcmask 261120
        %v217 = vsel %vm216, %v201, 0
        %v219 = vsel %vm216, %v215, 0
        %221 = vmatprep.subr.mxu0 0.0
        %222 = vmatpush1.msra.mxu0 0.0
        %223 = vmatprep.subr.mxu0 0.0
        %224 = vmatpush1.msra.mxu0 0.0
        %225 = vmatprep.subr.mxu0 0.0
        %226 = vmatpush1.msra.mxu0 0.0
        %227 = vmatprep.subr.mxu0 0.0
        %228 = vmatpush1.msra.mxu0 0.0
        %229 = vmatprep.subr.mxu0 0.0
        %230 = vmatpush1.msra.mxu0 0.0
        %231 = vmatprep.subr.mxu0 0.0
        %232 = vmatpush1.msra.mxu0 0.0
        %233 = vmatprep.subr.mxu0 0.0
        %234 = vmatpush1.msra.mxu0 0.0
        %235 = vmatprep.subr.mxu0 0.0
        %236 = vmatpush1.msra.mxu0 0.0
        %237 = vmatprep.subr.mxu0 0.0
        %238 = vmatpush1.msra.mxu0 0.0
        %239 = vmatprep.subr.mxu0 0.0
        %240 = vmatpush1.msra.mxu0 0.0
        %241 = vmatprep.subr.mxu0 0.0
        %242 = vmatpush1.msra.mxu0 0.0
        %243 = vmatprep.subr.mxu0 0.0
        %244 = vmatpush1.msra.mxu0 0.0
        %245 = vmatprep.subr.mxu0 0.0
        %246 = vmatpush1.msra.mxu0 %v164
        %247 = vmatprep.subr.mxu0 0.0
        %248 = vmatpush1.msra.mxu0 %v163
        %249 = vmatprep.subr.mxu0 0.0
        %250 = vmatpush1.msra.mxu0 %v162
        %251 = vmatprep.subr.mxu0 0.0
        %252 = vmatpush1.msra.mxu0 %v161
        %253 = vmatprep.subr.mxu0 0.0
        %254 = vmatpush2.msra.mxu0 0.0
        %255 = vmatprep.subr.mxu0 0.0
        %256 = vmatpush2.msra.mxu0 0.0
        %257 = vmatprep.subr.mxu0 0.0
        %258 = vmatpush2.msra.mxu0 0.0
        %259 = vmatprep.subr.mxu0 0.0
        %260 = vmatpush2.msra.mxu0 0.0
        %261 = vmatprep.subr.mxu0 0.0
        %262 = vmatpush2.msra.mxu0 0.0
        %263 = vmatprep.subr.mxu0 0.0
        %264 = vmatpush2.msra.mxu0 0.0
        %265 = vmatprep.subr.mxu0 0.0
        %266 = vmatpush2.msra.mxu0 0.0
        %267 = vmatprep.subr.mxu0 0.0
        %268 = vmatpush2.msra.mxu0 0.0
        %269 = vmatprep.subr.mxu0 0.0
        %270 = vmatpush2.msra.mxu0 0.0
        %271 = vmatprep.subr.mxu0 0.0
        %272 = vmatpush2.msra.mxu0 0.0
        %273 = vmatprep.subr.mxu0 0.0
        %274 = vmatpush2.msra.mxu0 0.0
        %275 = vmatprep.subr.mxu0 0.0
        %276 = vmatpush2.msra.mxu0 0.0
        %277 = vmatprep.subr.mxu0 0.0
        %278 = vmatpush2.msra.mxu0 0.0
        %279 = vmatprep.subr.mxu0 0.0
        %280 = vmatpush2.msra.mxu0 0.0
        %281 = vmatprep.subr.mxu0 0.0
        %282 = vmatpush2.msra.mxu0 0.0
        %283 = vmatprep.subr.mxu0 0.0
        %284 = vmatpush2.msra.mxu0 0.0
        %285 = vmatprep.mubr.f32.mxu0 0.0
        %286 = vmatmul.mubr.f32.gmra.mxu0 %v217
        %v287 = vpop.f32.mrf.mxu0
        %v288 = vadd.f32 0.0, %v287
        %v289 = vpop.f32.mrf.mxu0
        %290 = vmatprep.mubr.f32.mxu0 0.0
        %291 = vmatmul.mubr.f32.gmra.mxu0 %v219
        %v292 = vpop.f32.mrf.mxu0
        %v293 = vadd.f32 0.0, %v292
        %v294 = vpop.f32.mrf.mxu0
        %295 = vdwg.mxu0
        %v298 = vcombine.high %v288, %v288
        %v300 = vunpack.c.l.s4 1966171168
        %v301 = vunpack.c.0.s8 %v300
        %v302 = vlaneseq
        %v303 = vshrl.u32 %v302, 7
        %v304 = vsub.s32 %v301, %v303
        %v305 = vrot.slane %v288, %v304
        %v307 = vunpack.c.l.s4 1966171168
        %v308 = vunpack.c.0.s8 %v307
        %v309 = vlaneseq
        %v310 = vshrl.u32 %v309, 7
        %v311 = vsub.s32 %v308, %v310
        %v312 = vrot.slane %v298, %v311
        %v313 = vcombine.high %v305, %v305
        %v314 = vcombine.high %v312, %v312
        %v316 = vunpack.c.l.s4 1966171168
        %v317 = vunpack.c.0.s8 %v316
        %v318 = vlaneseq
        %v319 = vshrl.u32 %v318, 7
        %v320 = vsub.s32 %v317, %v319
        %v321 = vrot.slane %v305, %v320
        %v323 = vunpack.c.l.s4 1966171168
        %v324 = vunpack.c.0.s8 %v323
        %v325 = vlaneseq
        %v326 = vshrl.u32 %v325, 7
        %v327 = vsub.s32 %v324, %v326
        %v328 = vrot.slane %v312, %v327
        %v330 = vunpack.c.l.s4 1966171168
        %v331 = vunpack.c.0.s8 %v330
        %v332 = vlaneseq
        %v333 = vshrl.u32 %v332, 7
        %v334 = vsub.s32 %v331, %v333
        %v335 = vrot.slane %v313, %v334
        %v337 = vunpack.c.l.s4 1966171168
        %v338 = vunpack.c.0.s8 %v337
        %v339 = vlaneseq
        %v340 = vshrl.u32 %v339, 7
        %v341 = vsub.s32 %v338, %v340
        %v342 = vrot.slane %v314, %v341
        %v343 = vcombine.high %v321, %v321
        %v344 = vcombine.high %v328, %v328
        %v345 = vcombine.high %v335, %v335
        %v346 = vcombine.high %v342, %v342
        %v347 = vcombine.high %v293, %v293
        %v349 = vunpack.c.l.s4 1966171168
        %v350 = vunpack.c.0.s8 %v349
        %v351 = vlaneseq
        %v352 = vshrl.u32 %v351, 7
        %v353 = vsub.s32 %v350, %v352
        %v354 = vrot.slane %v293, %v353
        %v356 = vunpack.c.l.s4 1966171168
        %v357 = vunpack.c.0.s8 %v356
        %v358 = vlaneseq
        %v359 = vshrl.u32 %v358, 7
        %v360 = vsub.s32 %v357, %v359
        %v361 = vrot.slane %v347, %v360
        %v362 = vcombine.high %v354, %v354
        %v363 = vcombine.high %v361, %v361
        %v365 = vunpack.c.l.s4 1966171168
        %v366 = vunpack.c.0.s8 %v365
        %v367 = vlaneseq
        %v368 = vshrl.u32 %v367, 7
        %v369 = vsub.s32 %v366, %v368
        %v370 = vrot.slane %v354, %v369
        %v372 = vunpack.c.l.s4 1966171168
        %v373 = vunpack.c.0.s8 %v372
        %v374 = vlaneseq
        %v375 = vshrl.u32 %v374, 7
        %v376 = vsub.s32 %v373, %v375
        %v377 = vrot.slane %v361, %v376
        %v379 = vunpack.c.l.s4 1966171168
        %v380 = vunpack.c.0.s8 %v379
        %v381 = vlaneseq
        %v382 = vshrl.u32 %v381, 7
        %v383 = vsub.s32 %v380, %v382
        %v384 = vrot.slane %v362, %v383
        %v386 = vunpack.c.l.s4 1966171168
        %v387 = vunpack.c.0.s8 %v386
        %v388 = vlaneseq
        %v389 = vshrl.u32 %v388, 7
        %v390 = vsub.s32 %v387, %v389
        %v391 = vrot.slane %v363, %v390
        %v392 = vcombine.high %v370, %v370
        %v393 = vcombine.high %v377, %v377
        %v394 = vcombine.high %v384, %v384
        %v395 = vcombine.high %v391, %v391
        %412 = vst [vmem:[%s137] sm:$0x1] %v321
        %413 = vst [vmem:[%s137 + $0x4] sm:$0x1] %v335
        %414 = vst [vmem:[%s137 + $0x8] sm:$0x1] %v343
        %415 = vst [vmem:[%s137 + $0xc] sm:$0x1] %v345
        %416 = vst [vmem:[%s137 + $0x10] sm:$0x1] %v328
        %417 = vst [vmem:[%s137 + $0x14] sm:$0x1] %v342
        %418 = vst [vmem:[%s137 + $0x18] sm:$0x1] %v344
        %419 = vst [vmem:[%s137 + $0x1c] sm:$0x1] %v346
        %420 = vst [vmem:[%s137 + $0x20] sm:$0x1] %v370
        %421 = vst [vmem:[%s137 + $0x24] sm:$0x1] %v384
        %422 = vst [vmem:[%s137 + $0x28] sm:$0x1] %v392
        %423 = vst [vmem:[%s137 + $0x2c] sm:$0x1] %v394
        %424 = vst [vmem:[%s137 + $0x30] sm:$0x1] %v377
        %425 = vst [vmem:[%s137 + $0x34] sm:$0x1] %v391
        %426 = vst [vmem:[%s137 + $0x38] sm:$0x1] %v393
        %427 = vst [vmem:[%s137 + $0x3c] sm:$0x1] %v395
        %v428 = vld [vmem:[%s142 + $0x1] sm:$0x1]
        %v429 = vld [vmem:[%s142 + $0x5] sm:$0x1]
        %v430 = vld [vmem:[%s142 + $0x9] sm:$0x1]
        %v431 = vld [vmem:[%s142 + $0xd] sm:$0x1]
        %v432 = vld [vmem:[%s142 + $0x11] sm:$0x1]
        %v433 = vld [vmem:[%s142 + $0x15] sm:$0x1]
        %v434 = vld [vmem:[%s142 + $0x19] sm:$0x1]
        %v435 = vld [vmem:[%s142 + $0x1d] sm:$0x1]
        %v436 = vld [vmem:[%s142 + $0x21] sm:$0x1]
        %v437 = vld [vmem:[%s142 + $0x25] sm:$0x1]
        %v438 = vld [vmem:[%s142 + $0x29] sm:$0x1]
        %v439 = vld [vmem:[%s142 + $0x2d] sm:$0x1]
        %v440 = vld [vmem:[%s142 + $0x31] sm:$0x1]
        %v441 = vld [vmem:[%s142 + $0x35] sm:$0x1]
        %v442 = vld [vmem:[%s142 + $0x39] sm:$0x1]
        %v443 = vld [vmem:[%s142 + $0x3d] sm:$0x1]
        %s444 = scalar_lea.vmem %s1, 32
        %v445 = vld [vmem:[%s444] sm:$0xff]
        %v446 = vld [vmem:[%s444 + $0x8] sm:$0xff]
        %v447 = vld [vmem:[%s444 + $0x10] sm:$0xff]
        %v448 = vld [vmem:[%s444 + $0x18] sm:$0xff]
        %v465 = vrot.slane %v429, 7
        %v466 = vsel %vm182, %v465, %v428
        %v467 = vrot.slane %v430, 6
        %v468 = vsel %vm185, %v467, %v466
        %v469 = vrot.slane %v431, 5
        %v470 = vsel %vm188, %v469, %v468
        %v471 = vrot.slane %v432, 4
        %v472 = vsel %vm191, %v471, %v470
        %v473 = vrot.slane %v433, 3
        %v474 = vsel %vm194, %v473, %v472
        %v475 = vrot.slane %v434, 2
        %v476 = vsel %vm197, %v475, %v474
        %v477 = vrot.slane %v435, 1
        %v478 = vsel %vm200, %v477, %v476
        %v479 = vrot.slane %v437, 7
        %v480 = vsel %vm182, %v479, %v436
        %v481 = vrot.slane %v438, 6
        %v482 = vsel %vm185, %v481, %v480
        %v483 = vrot.slane %v439, 5
        %v484 = vsel %vm188, %v483, %v482
        %v485 = vrot.slane %v440, 4
        %v486 = vsel %vm191, %v485, %v484
        %v487 = vrot.slane %v441, 3
        %v488 = vsel %vm194, %v487, %v486
        %v489 = vrot.slane %v442, 2
        %v490 = vsel %vm197, %v489, %v488
        %v491 = vrot.slane %v443, 1
        %v492 = vsel %vm200, %v491, %v490
        %v493 = vsel %vm216, %v478, 0
        %v495 = vsel %vm216, %v492, 0
        %497 = vmatprep.subr.mxu0 0.0
        %498 = vmatpush1.msra.mxu0 0.0
        %499 = vmatprep.subr.mxu0 0.0
        %500 = vmatpush1.msra.mxu0 0.0
        %501 = vmatprep.subr.mxu0 0.0
        %502 = vmatpush1.msra.mxu0 0.0
        %503 = vmatprep.subr.mxu0 0.0
        %504 = vmatpush1.msra.mxu0 0.0
        %505 = vmatprep.subr.mxu0 0.0
        %506 = vmatpush1.msra.mxu0 0.0
        %507 = vmatprep.subr.mxu0 0.0
        %508 = vmatpush1.msra.mxu0 0.0
        %509 = vmatprep.subr.mxu0 0.0
        %510 = vmatpush1.msra.mxu0 0.0
        %511 = vmatprep.subr.mxu0 0.0
        %512 = vmatpush1.msra.mxu0 0.0
        %513 = vmatprep.subr.mxu0 0.0
        %514 = vmatpush1.msra.mxu0 0.0
        %515 = vmatprep.subr.mxu0 0.0
        %516 = vmatpush1.msra.mxu0 0.0
        %517 = vmatprep.subr.mxu0 0.0
        %518 = vmatpush1.msra.mxu0 0.0
        %519 = vmatprep.subr.mxu0 0.0
        %520 = vmatpush1.msra.mxu0 0.0
        %521 = vmatprep.subr.mxu0 0.0
        %522 = vmatpush1.msra.mxu0 %v448
        %523 = vmatprep.subr.mxu0 0.0
        %524 = vmatpush1.msra.mxu0 %v447
        %525 = vmatprep.subr.mxu0 0.0
        %526 = vmatpush1.msra.mxu0 %v446
        %527 = vmatprep.subr.mxu0 0.0
        %528 = vmatpush1.msra.mxu0 %v445
        %529 = vmatprep.subr.mxu0 0.0
        %530 = vmatpush2.msra.mxu0 0.0
        %531 = vmatprep.subr.mxu0 0.0
        %532 = vmatpush2.msra.mxu0 0.0
        %533 = vmatprep.subr.mxu0 0.0
        %534 = vmatpush2.msra.mxu0 0.0
        %535 = vmatprep.subr.mxu0 0.0
        %536 = vmatpush2.msra.mxu0 0.0
        %537 = vmatprep.subr.mxu0 0.0
        %538 = vmatpush2.msra.mxu0 0.0
        %539 = vmatprep.subr.mxu0 0.0
        %540 = vmatpush2.msra.mxu0 0.0
        %541 = vmatprep.subr.mxu0 0.0
        %542 = vmatpush2.msra.mxu0 0.0
        %543 = vmatprep.subr.mxu0 0.0
        %544 = vmatpush2.msra.mxu0 0.0
        %545 = vmatprep.subr.mxu0 0.0
        %546 = vmatpush2.msra.mxu0 0.0
        %547 = vmatprep.subr.mxu0 0.0
        %548 = vmatpush2.msra.mxu0 0.0
        %549 = vmatprep.subr.mxu0 0.0
        %550 = vmatpush2.msra.mxu0 0.0
        %551 = vmatprep.subr.mxu0 0.0
        %552 = vmatpush2.msra.mxu0 0.0
        %553 = vmatprep.subr.mxu0 0.0
        %554 = vmatpush2.msra.mxu0 0.0
        %555 = vmatprep.subr.mxu0 0.0
        %556 = vmatpush2.msra.mxu0 0.0
        %557 = vmatprep.subr.mxu0 0.0
        %558 = vmatpush2.msra.mxu0 0.0
        %559 = vmatprep.subr.mxu0 0.0
        %560 = vmatpush2.msra.mxu0 0.0
        %561 = vmatprep.mubr.f32.mxu0 0.0
        %562 = vmatmul.mubr.f32.gmra.mxu0 %v493
        %v563 = vpop.f32.mrf.mxu0
        %v564 = vadd.f32 0.0, %v563
        %v565 = vpop.f32.mrf.mxu0
        %566 = vmatprep.mubr.f32.mxu0 0.0
        %567 = vmatmul.mubr.f32.gmra.mxu0 %v495
        %v568 = vpop.f32.mrf.mxu0
        %v569 = vadd.f32 0.0, %v568
        %v570 = vpop.f32.mrf.mxu0
        %571 = vdwg.mxu0
        %v574 = vcombine.high %v564, %v564
        %v576 = vunpack.c.l.s4 1966171168
        %v577 = vunpack.c.0.s8 %v576
        %v578 = vlaneseq
        %v579 = vshrl.u32 %v578, 7
        %v580 = vsub.s32 %v577, %v579
        %v581 = vrot.slane %v564, %v580
        %v583 = vunpack.c.l.s4 1966171168
        %v584 = vunpack.c.0.s8 %v583
        %v585 = vlaneseq
        %v586 = vshrl.u32 %v585, 7
        %v587 = vsub.s32 %v584, %v586
        %v588 = vrot.slane %v574, %v587
        %v589 = vcombine.high %v581, %v581
        %v590 = vcombine.high %v588, %v588
        %v592 = vunpack.c.l.s4 1966171168
        %v593 = vunpack.c.0.s8 %v592
        %v594 = vlaneseq
        %v595 = vshrl.u32 %v594, 7
        %v596 = vsub.s32 %v593, %v595
        %v597 = vrot.slane %v581, %v596
        %v599 = vunpack.c.l.s4 1966171168
        %v600 = vunpack.c.0.s8 %v599
        %v601 = vlaneseq
        %v602 = vshrl.u32 %v601, 7
        %v603 = vsub.s32 %v600, %v602
        %v604 = vrot.slane %v588, %v603
        %v606 = vunpack.c.l.s4 1966171168
        %v607 = vunpack.c.0.s8 %v606
        %v608 = vlaneseq
        %v609 = vshrl.u32 %v608, 7
        %v610 = vsub.s32 %v607, %v609
        %v611 = vrot.slane %v589, %v610
        %v613 = vunpack.c.l.s4 1966171168
        %v614 = vunpack.c.0.s8 %v613
        %v615 = vlaneseq
        %v616 = vshrl.u32 %v615, 7
        %v617 = vsub.s32 %v614, %v616
        %v618 = vrot.slane %v590, %v617
        %v619 = vcombine.high %v597, %v597
        %v620 = vcombine.high %v604, %v604
        %v621 = vcombine.high %v611, %v611
        %v622 = vcombine.high %v618, %v618
        %v623 = vcombine.high %v569, %v569
        %v625 = vunpack.c.l.s4 1966171168
        %v626 = vunpack.c.0.s8 %v625
        %v627 = vlaneseq
        %v628 = vshrl.u32 %v627, 7
        %v629 = vsub.s32 %v626, %v628
        %v630 = vrot.slane %v569, %v629
        %v632 = vunpack.c.l.s4 1966171168
        %v633 = vunpack.c.0.s8 %v632
        %v634 = vlaneseq
        %v635 = vshrl.u32 %v634, 7
        %v636 = vsub.s32 %v633, %v635
        %v637 = vrot.slane %v623, %v636
        %v638 = vcombine.high %v630, %v630
        %v639 = vcombine.high %v637, %v637
        %v641 = vunpack.c.l.s4 1966171168
        %v642 = vunpack.c.0.s8 %v641
        %v643 = vlaneseq
        %v644 = vshrl.u32 %v643, 7
        %v645 = vsub.s32 %v642, %v644
        %v646 = vrot.slane %v630, %v645
        %v648 = vunpack.c.l.s4 1966171168
        %v649 = vunpack.c.0.s8 %v648
        %v650 = vlaneseq
        %v651 = vshrl.u32 %v650, 7
        %v652 = vsub.s32 %v649, %v651
        %v653 = vrot.slane %v637, %v652
        %v655 = vunpack.c.l.s4 1966171168
        %v656 = vunpack.c.0.s8 %v655
        %v657 = vlaneseq
        %v658 = vshrl.u32 %v657, 7
        %v659 = vsub.s32 %v656, %v658
        %v660 = vrot.slane %v638, %v659
        %v662 = vunpack.c.l.s4 1966171168
        %v663 = vunpack.c.0.s8 %v662
        %v664 = vlaneseq
        %v665 = vshrl.u32 %v664, 7
        %v666 = vsub.s32 %v663, %v665
        %v667 = vrot.slane %v639, %v666
        %v668 = vcombine.high %v646, %v646
        %v669 = vcombine.high %v653, %v653
        %v670 = vcombine.high %v660, %v660
        %v671 = vcombine.high %v667, %v667
        %688 = vst [vmem:[%s137 + $0x1] sm:$0x1] %v597
        %689 = vst [vmem:[%s137 + $0x5] sm:$0x1] %v611
        %690 = vst [vmem:[%s137 + $0x9] sm:$0x1] %v619
        %691 = vst [vmem:[%s137 + $0xd] sm:$0x1] %v621
        %692 = vst [vmem:[%s137 + $0x11] sm:$0x1] %v604
        %693 = vst [vmem:[%s137 + $0x15] sm:$0x1] %v618
        %694 = vst [vmem:[%s137 + $0x19] sm:$0x1] %v620
        %695 = vst [vmem:[%s137 + $0x1d] sm:$0x1] %v622
        %696 = vst [vmem:[%s137 + $0x21] sm:$0x1] %v646
        %697 = vst [vmem:[%s137 + $0x25] sm:$0x1] %v660
        %698 = vst [vmem:[%s137 + $0x29] sm:$0x1] %v668
        %699 = vst [vmem:[%s137 + $0x2d] sm:$0x1] %v670
        %700 = vst [vmem:[%s137 + $0x31] sm:$0x1] %v653
        %701 = vst [vmem:[%s137 + $0x35] sm:$0x1] %v667
        %702 = vst [vmem:[%s137 + $0x39] sm:$0x1] %v669
        %703 = vst [vmem:[%s137 + $0x3d] sm:$0x1] %v671
        %v704 = vld [vmem:[%s142 + $0x2] sm:$0x1]
        %v705 = vld [vmem:[%s142 + $0x6] sm:$0x1]
        %v706 = vld [vmem:[%s142 + $0xa] sm:$0x1]
        %v707 = vld [vmem:[%s142 + $0xe] sm:$0x1]
        %v708 = vld [vmem:[%s142 + $0x12] sm:$0x1]
        %v709 = vld [vmem:[%s142 + $0x16] sm:$0x1]
        %v710 = vld [vmem:[%s142 + $0x1a] sm:$0x1]
        %v711 = vld [vmem:[%s142 + $0x1e] sm:$0x1]
        %v712 = vld [vmem:[%s142 + $0x22] sm:$0x1]
        %v713 = vld [vmem:[%s142 + $0x26] sm:$0x1]
        %v714 = vld [vmem:[%s142 + $0x2a] sm:$0x1]
        %v715 = vld [vmem:[%s142 + $0x2e] sm:$0x1]
        %v716 = vld [vmem:[%s142 + $0x32] sm:$0x1]
        %v717 = vld [vmem:[%s142 + $0x36] sm:$0x1]
        %v718 = vld [vmem:[%s142 + $0x3a] sm:$0x1]
        %v719 = vld [vmem:[%s142 + $0x3e] sm:$0x1]
        %s720 = scalar_lea.vmem %s1, 64
        %v721 = vld [vmem:[%s720] sm:$0xff]
        %v722 = vld [vmem:[%s720 + $0x8] sm:$0xff]
        %v723 = vld [vmem:[%s720 + $0x10] sm:$0xff]
        %v724 = vld [vmem:[%s720 + $0x18] sm:$0xff]
        %v741 = vrot.slane %v705, 7
        %v742 = vsel %vm182, %v741, %v704
        %v743 = vrot.slane %v706, 6
        %v744 = vsel %vm185, %v743, %v742
        %v745 = vrot.slane %v707, 5
        %v746 = vsel %vm188, %v745, %v744
        %v747 = vrot.slane %v708, 4
        %v748 = vsel %vm191, %v747, %v746
        %v749 = vrot.slane %v709, 3
        %v750 = vsel %vm194, %v749, %v748
        %v751 = vrot.slane %v710, 2
        %v752 = vsel %vm197, %v751, %v750
        %v753 = vrot.slane %v711, 1
        %v754 = vsel %vm200, %v753, %v752
        %v755 = vrot.slane %v713, 7
        %v756 = vsel %vm182, %v755, %v712
        %v757 = vrot.slane %v714, 6
        %v758 = vsel %vm185, %v757, %v756
        %v759 = vrot.slane %v715, 5
        %v760 = vsel %vm188, %v759, %v758
        %v761 = vrot.slane %v716, 4
        %v762 = vsel %vm191, %v761, %v760
        %v763 = vrot.slane %v717, 3
        %v764 = vsel %vm194, %v763, %v762
        %v765 = vrot.slane %v718, 2
        %v766 = vsel %vm197, %v765, %v764
        %v767 = vrot.slane %v719, 1
        %v768 = vsel %vm200, %v767, %v766
        %v769 = vsel %vm216, %v754, 0
        %v771 = vsel %vm216, %v768, 0
        %773 = vmatprep.subr.mxu0 0.0
        %774 = vmatpush1.msra.mxu0 0.0
        %775 = vmatprep.subr.mxu0 0.0
        %776 = vmatpush1.msra.mxu0 0.0
        %777 = vmatprep.subr.mxu0 0.0
        %778 = vmatpush1.msra.mxu0 0.0
        %779 = vmatprep.subr.mxu0 0.0
        %780 = vmatpush1.msra.mxu0 0.0
        %781 = vmatprep.subr.mxu0 0.0
        %782 = vmatpush1.msra.mxu0 0.0
        %783 = vmatprep.subr.mxu0 0.0
        %784 = vmatpush1.msra.mxu0 0.0
        %785 = vmatprep.subr.mxu0 0.0
        %786 = vmatpush1.msra.mxu0 0.0
        %787 = vmatprep.subr.mxu0 0.0
        %788 = vmatpush1.msra.mxu0 0.0
        %789 = vmatprep.subr.mxu0 0.0
        %790 = vmatpush1.msra.mxu0 0.0
        %791 = vmatprep.subr.mxu0 0.0
        %792 = vmatpush1.msra.mxu0 0.0
        %793 = vmatprep.subr.mxu0 0.0
        %794 = vmatpush1.msra.mxu0 0.0
        %795 = vmatprep.subr.mxu0 0.0
        %796 = vmatpush1.msra.mxu0 0.0
        %797 = vmatprep.subr.mxu0 0.0
        %798 = vmatpush1.msra.mxu0 %v724
        %799 = vmatprep.subr.mxu0 0.0
        %800 = vmatpush1.msra.mxu0 %v723
        %801 = vmatprep.subr.mxu0 0.0
        %802 = vmatpush1.msra.mxu0 %v722
        %803 = vmatprep.subr.mxu0 0.0
        %804 = vmatpush1.msra.mxu0 %v721
        %805 = vmatprep.subr.mxu0 0.0
        %806 = vmatpush2.msra.mxu0 0.0
        %807 = vmatprep.subr.mxu0 0.0
        %808 = vmatpush2.msra.mxu0 0.0
        %809 = vmatprep.subr.mxu0 0.0
        %810 = vmatpush2.msra.mxu0 0.0
        %811 = vmatprep.subr.mxu0 0.0
        %812 = vmatpush2.msra.mxu0 0.0
        %813 = vmatprep.subr.mxu0 0.0
        %814 = vmatpush2.msra.mxu0 0.0
        %815 = vmatprep.subr.mxu0 0.0
        %816 = vmatpush2.msra.mxu0 0.0
        %817 = vmatprep.subr.mxu0 0.0
        %818 = vmatpush2.msra.mxu0 0.0
        %819 = vmatprep.subr.mxu0 0.0
        %820 = vmatpush2.msra.mxu0 0.0
        %821 = vmatprep.subr.mxu0 0.0
        %822 = vmatpush2.msra.mxu0 0.0
        %823 = vmatprep.subr.mxu0 0.0
        %824 = vmatpush2.msra.mxu0 0.0
        %825 = vmatprep.subr.mxu0 0.0
        %826 = vmatpush2.msra.mxu0 0.0
        %827 = vmatprep.subr.mxu0 0.0
        %828 = vmatpush2.msra.mxu0 0.0
        %829 = vmatprep.subr.mxu0 0.0
        %830 = vmatpush2.msra.mxu0 0.0
        %831 = vmatprep.subr.mxu0 0.0
        %832 = vmatpush2.msra.mxu0 0.0
        %833 = vmatprep.subr.mxu0 0.0
        %834 = vmatpush2.msra.mxu0 0.0
        %835 = vmatprep.subr.mxu0 0.0
        %836 = vmatpush2.msra.mxu0 0.0
        %837 = vmatprep.mubr.f32.mxu0 0.0
        %838 = vmatmul.mubr.f32.gmra.mxu0 %v769
        %v839 = vpop.f32.mrf.mxu0
        %v840 = vadd.f32 0.0, %v839
        %v841 = vpop.f32.mrf.mxu0
        %842 = vmatprep.mubr.f32.mxu0 0.0
        %843 = vmatmul.mubr.f32.gmra.mxu0 %v771
        %v844 = vpop.f32.mrf.mxu0
        %v845 = vadd.f32 0.0, %v844
        %v846 = vpop.f32.mrf.mxu0
        %847 = vdwg.mxu0
        %v850 = vcombine.high %v840, %v840
        %v852 = vunpack.c.l.s4 1966171168
        %v853 = vunpack.c.0.s8 %v852
        %v854 = vlaneseq
        %v855 = vshrl.u32 %v854, 7
        %v856 = vsub.s32 %v853, %v855
        %v857 = vrot.slane %v840, %v856
        %v859 = vunpack.c.l.s4 1966171168
        %v860 = vunpack.c.0.s8 %v859
        %v861 = vlaneseq
        %v862 = vshrl.u32 %v861, 7
        %v863 = vsub.s32 %v860, %v862
        %v864 = vrot.slane %v850, %v863
        %v865 = vcombine.high %v857, %v857
        %v866 = vcombine.high %v864, %v864
        %v868 = vunpack.c.l.s4 1966171168
        %v869 = vunpack.c.0.s8 %v868
        %v870 = vlaneseq
        %v871 = vshrl.u32 %v870, 7
        %v872 = vsub.s32 %v869, %v871
        %v873 = vrot.slane %v857, %v872
        %v875 = vunpack.c.l.s4 1966171168
        %v876 = vunpack.c.0.s8 %v875
        %v877 = vlaneseq
        %v878 = vshrl.u32 %v877, 7
        %v879 = vsub.s32 %v876, %v878
        %v880 = vrot.slane %v864, %v879
        %v882 = vunpack.c.l.s4 1966171168
        %v883 = vunpack.c.0.s8 %v882
        %v884 = vlaneseq
        %v885 = vshrl.u32 %v884, 7
        %v886 = vsub.s32 %v883, %v885
        %v887 = vrot.slane %v865, %v886
        %v889 = vunpack.c.l.s4 1966171168
        %v890 = vunpack.c.0.s8 %v889
        %v891 = vlaneseq
        %v892 = vshrl.u32 %v891, 7
        %v893 = vsub.s32 %v890, %v892
        %v894 = vrot.slane %v866, %v893
        %v895 = vcombine.high %v873, %v873
        %v896 = vcombine.high %v880, %v880
        %v897 = vcombine.high %v887, %v887
        %v898 = vcombine.high %v894, %v894
        %v899 = vcombine.high %v845, %v845
        %v901 = vunpack.c.l.s4 1966171168
        %v902 = vunpack.c.0.s8 %v901
        %v903 = vlaneseq
        %v904 = vshrl.u32 %v903, 7
        %v905 = vsub.s32 %v902, %v904
        %v906 = vrot.slane %v845, %v905
        %v908 = vunpack.c.l.s4 1966171168
        %v909 = vunpack.c.0.s8 %v908
        %v910 = vlaneseq
        %v911 = vshrl.u32 %v910, 7
        %v912 = vsub.s32 %v909, %v911
        %v913 = vrot.slane %v899, %v912
        %v914 = vcombine.high %v906, %v906
        %v915 = vcombine.high %v913, %v913
        %v917 = vunpack.c.l.s4 1966171168
        %v918 = vunpack.c.0.s8 %v917
        %v919 = vlaneseq
        %v920 = vshrl.u32 %v919, 7
        %v921 = vsub.s32 %v918, %v920
        %v922 = vrot.slane %v906, %v921
        %v924 = vunpack.c.l.s4 1966171168
        %v925 = vunpack.c.0.s8 %v924
        %v926 = vlaneseq
        %v927 = vshrl.u32 %v926, 7
        %v928 = vsub.s32 %v925, %v927
        %v929 = vrot.slane %v913, %v928
        %v931 = vunpack.c.l.s4 1966171168
        %v932 = vunpack.c.0.s8 %v931
        %v933 = vlaneseq
        %v934 = vshrl.u32 %v933, 7
        %v935 = vsub.s32 %v932, %v934
        %v936 = vrot.slane %v914, %v935
        %v938 = vunpack.c.l.s4 1966171168
        %v939 = vunpack.c.0.s8 %v938
        %v940 = vlaneseq
        %v941 = vshrl.u32 %v940, 7
        %v942 = vsub.s32 %v939, %v941
        %v943 = vrot.slane %v915, %v942
        %v944 = vcombine.high %v922, %v922
        %v945 = vcombine.high %v929, %v929
        %v946 = vcombine.high %v936, %v936
        %v947 = vcombine.high %v943, %v943
        %964 = vst [vmem:[%s137 + $0x2] sm:$0x1] %v873
        %965 = vst [vmem:[%s137 + $0x6] sm:$0x1] %v887
        %966 = vst [vmem:[%s137 + $0xa] sm:$0x1] %v895
        %967 = vst [vmem:[%s137 + $0xe] sm:$0x1] %v897
        %968 = vst [vmem:[%s137 + $0x12] sm:$0x1] %v880
        %969 = vst [vmem:[%s137 + $0x16] sm:$0x1] %v894
        %970 = vst [vmem:[%s137 + $0x1a] sm:$0x1] %v896
        %971 = vst [vmem:[%s137 + $0x1e] sm:$0x1] %v898
        %972 = vst [vmem:[%s137 + $0x22] sm:$0x1] %v922
        %973 = vst [vmem:[%s137 + $0x26] sm:$0x1] %v936
        %974 = vst [vmem:[%s137 + $0x2a] sm:$0x1] %v944
        %975 = vst [vmem:[%s137 + $0x2e] sm:$0x1] %v946
        %976 = vst [vmem:[%s137 + $0x32] sm:$0x1] %v929
        %977 = vst [vmem:[%s137 + $0x36] sm:$0x1] %v943
        %978 = vst [vmem:[%s137 + $0x3a] sm:$0x1] %v945
        %979 = vst [vmem:[%s137 + $0x3e] sm:$0x1] %v947
        %v980 = vld [vmem:[%s142 + $0x3] sm:$0x1]
        %v981 = vld [vmem:[%s142 + $0x7] sm:$0x1]
        %v982 = vld [vmem:[%s142 + $0xb] sm:$0x1]
        %v983 = vld [vmem:[%s142 + $0xf] sm:$0x1]
        %v984 = vld [vmem:[%s142 + $0x13] sm:$0x1]
        %v985 = vld [vmem:[%s142 + $0x17] sm:$0x1]
        %v986 = vld [vmem:[%s142 + $0x1b] sm:$0x1]
        %v987 = vld [vmem:[%s142 + $0x1f] sm:$0x1]
        %v988 = vld [vmem:[%s142 + $0x23] sm:$0x1]
        %v989 = vld [vmem:[%s142 + $0x27] sm:$0x1]
        %v990 = vld [vmem:[%s142 + $0x2b] sm:$0x1]
        %v991 = vld [vmem:[%s142 + $0x2f] sm:$0x1]
        %v992 = vld [vmem:[%s142 + $0x33] sm:$0x1]
        %v993 = vld [vmem:[%s142 + $0x37] sm:$0x1]
        %v994 = vld [vmem:[%s142 + $0x3b] sm:$0x1]
        %v995 = vld [vmem:[%s142 + $0x3f] sm:$0x1]
        %s996 = scalar_lea.vmem %s1, 96
        %v997 = vld [vmem:[%s996] sm:$0xff]
        %v998 = vld [vmem:[%s996 + $0x8] sm:$0xff]
        %v999 = vld [vmem:[%s996 + $0x10] sm:$0xff]
        %v1000 = vld [vmem:[%s996 + $0x18] sm:$0xff]
        %v1017 = vrot.slane %v981, 7
        %v1018 = vsel %vm182, %v1017, %v980
        %v1019 = vrot.slane %v982, 6
        %v1020 = vsel %vm185, %v1019, %v1018
        %v1021 = vrot.slane %v983, 5
        %v1022 = vsel %vm188, %v1021, %v1020
        %v1023 = vrot.slane %v984, 4
        %v1024 = vsel %vm191, %v1023, %v1022
        %v1025 = vrot.slane %v985, 3
        %v1026 = vsel %vm194, %v1025, %v1024
        %v1027 = vrot.slane %v986, 2
        %v1028 = vsel %vm197, %v1027, %v1026
        %v1029 = vrot.slane %v987, 1
        %v1030 = vsel %vm200, %v1029, %v1028
        %v1031 = vrot.slane %v989, 7
        %v1032 = vsel %vm182, %v1031, %v988
        %v1033 = vrot.slane %v990, 6
        %v1034 = vsel %vm185, %v1033, %v1032
        %v1035 = vrot.slane %v991, 5
        %v1036 = vsel %vm188, %v1035, %v1034
        %v1037 = vrot.slane %v992, 4
        %v1038 = vsel %vm191, %v1037, %v1036
        %v1039 = vrot.slane %v993, 3
        %v1040 = vsel %vm194, %v1039, %v1038
        %v1041 = vrot.slane %v994, 2
        %v1042 = vsel %vm197, %v1041, %v1040
        %v1043 = vrot.slane %v995, 1
        %v1044 = vsel %vm200, %v1043, %v1042
        %v1045 = vsel %vm216, %v1030, 0
        %v1047 = vsel %vm216, %v1044, 0
        %1049 = vmatprep.subr.mxu0 0.0
        %1050 = vmatpush1.msra.mxu0 0.0
        %1051 = vmatprep.subr.mxu0 0.0
        %1052 = vmatpush1.msra.mxu0 0.0
        %1053 = vmatprep.subr.mxu0 0.0
        %1054 = vmatpush1.msra.mxu0 0.0
        %1055 = vmatprep.subr.mxu0 0.0
        %1056 = vmatpush1.msra.mxu0 0.0
        %1057 = vmatprep.subr.mxu0 0.0
        %1058 = vmatpush1.msra.mxu0 0.0
        %1059 = vmatprep.subr.mxu0 0.0
        %1060 = vmatpush1.msra.mxu0 0.0
        %1061 = vmatprep.subr.mxu0 0.0
        %1062 = vmatpush1.msra.mxu0 0.0
        %1063 = vmatprep.subr.mxu0 0.0
        %1064 = vmatpush1.msra.mxu0 0.0
        %1065 = vmatprep.subr.mxu0 0.0
        %1066 = vmatpush1.msra.mxu0 0.0
        %1067 = vmatprep.subr.mxu0 0.0
        %1068 = vmatpush1.msra.mxu0 0.0
        %1069 = vmatprep.subr.mxu0 0.0
        %1070 = vmatpush1.msra.mxu0 0.0
        %1071 = vmatprep.subr.mxu0 0.0
        %1072 = vmatpush1.msra.mxu0 0.0
        %1073 = vmatprep.subr.mxu0 0.0
        %1074 = vmatpush1.msra.mxu0 %v1000
        %1075 = vmatprep.subr.mxu0 0.0
        %1076 = vmatpush1.msra.mxu0 %v999
        %1077 = vmatprep.subr.mxu0 0.0
        %1078 = vmatpush1.msra.mxu0 %v998
        %1079 = vmatprep.subr.mxu0 0.0
        %1080 = vmatpush1.msra.mxu0 %v997
        %1081 = vmatprep.subr.mxu0 0.0
        %1082 = vmatpush2.msra.mxu0 0.0
        %1083 = vmatprep.subr.mxu0 0.0
        %1084 = vmatpush2.msra.mxu0 0.0
        %1085 = vmatprep.subr.mxu0 0.0
        %1086 = vmatpush2.msra.mxu0 0.0
        %1087 = vmatprep.subr.mxu0 0.0
        %1088 = vmatpush2.msra.mxu0 0.0
        %1089 = vmatprep.subr.mxu0 0.0
        %1090 = vmatpush2.msra.mxu0 0.0
        %1091 = vmatprep.subr.mxu0 0.0
        %1092 = vmatpush2.msra.mxu0 0.0
        %1093 = vmatprep.subr.mxu0 0.0
        %1094 = vmatpush2.msra.mxu0 0.0
        %1095 = vmatprep.subr.mxu0 0.0
        %1096 = vmatpush2.msra.mxu0 0.0
        %1097 = vmatprep.subr.mxu0 0.0
        %1098 = vmatpush2.msra.mxu0 0.0
        %1099 = vmatprep.subr.mxu0 0.0
        %1100 = vmatpush2.msra.mxu0 0.0
        %1101 = vmatprep.subr.mxu0 0.0
        %1102 = vmatpush2.msra.mxu0 0.0
        %1103 = vmatprep.subr.mxu0 0.0
        %1104 = vmatpush2.msra.mxu0 0.0
        %1105 = vmatprep.subr.mxu0 0.0
        %1106 = vmatpush2.msra.mxu0 0.0
        %1107 = vmatprep.subr.mxu0 0.0
        %1108 = vmatpush2.msra.mxu0 0.0
        %1109 = vmatprep.subr.mxu0 0.0
        %1110 = vmatpush2.msra.mxu0 0.0
        %1111 = vmatprep.subr.mxu0 0.0
        %1112 = vmatpush2.msra.mxu0 0.0
        %1113 = vmatprep.mubr.f32.mxu0 0.0
        %1114 = vmatmul.mubr.f32.gmra.mxu0 %v1045
        %v1115 = vpop.f32.mrf.mxu0
        %v1116 = vadd.f32 0.0, %v1115
        %v1117 = vpop.f32.mrf.mxu0
        %1118 = vmatprep.mubr.f32.mxu0 0.0
        %1119 = vmatmul.mubr.f32.gmra.mxu0 %v1047
        %v1120 = vpop.f32.mrf.mxu0
        %v1121 = vadd.f32 0.0, %v1120
        %v1122 = vpop.f32.mrf.mxu0
        %1123 = vdwg.mxu0
        %v1126 = vcombine.high %v1116, %v1116
        %v1128 = vunpack.c.l.s4 1966171168
        %v1129 = vunpack.c.0.s8 %v1128
        %v1130 = vlaneseq
        %v1131 = vshrl.u32 %v1130, 7
        %v1132 = vsub.s32 %v1129, %v1131
        %v1133 = vrot.slane %v1116, %v1132
        %v1135 = vunpack.c.l.s4 1966171168
        %v1136 = vunpack.c.0.s8 %v1135
        %v1137 = vlaneseq
        %v1138 = vshrl.u32 %v1137, 7
        %v1139 = vsub.s32 %v1136, %v1138
        %v1140 = vrot.slane %v1126, %v1139
        %v1141 = vcombine.high %v1133, %v1133
        %v1142 = vcombine.high %v1140, %v1140
        %v1144 = vunpack.c.l.s4 1966171168
        %v1145 = vunpack.c.0.s8 %v1144
        %v1146 = vlaneseq
        %v1147 = vshrl.u32 %v1146, 7
        %v1148 = vsub.s32 %v1145, %v1147
        %v1149 = vrot.slane %v1133, %v1148
        %v1151 = vunpack.c.l.s4 1966171168
        %v1152 = vunpack.c.0.s8 %v1151
        %v1153 = vlaneseq
        %v1154 = vshrl.u32 %v1153, 7
        %v1155 = vsub.s32 %v1152, %v1154
        %v1156 = vrot.slane %v1140, %v1155
        %v1158 = vunpack.c.l.s4 1966171168
        %v1159 = vunpack.c.0.s8 %v1158
        %v1160 = vlaneseq
        %v1161 = vshrl.u32 %v1160, 7
        %v1162 = vsub.s32 %v1159, %v1161
        %v1163 = vrot.slane %v1141, %v1162
        %v1165 = vunpack.c.l.s4 1966171168
        %v1166 = vunpack.c.0.s8 %v1165
        %v1167 = vlaneseq
        %v1168 = vshrl.u32 %v1167, 7
        %v1169 = vsub.s32 %v1166, %v1168
        %v1170 = vrot.slane %v1142, %v1169
        %v1171 = vcombine.high %v1149, %v1149
        %v1172 = vcombine.high %v1156, %v1156
        %v1173 = vcombine.high %v1163, %v1163
        %v1174 = vcombine.high %v1170, %v1170
        %v1175 = vcombine.high %v1121, %v1121
        %v1177 = vunpack.c.l.s4 1966171168
        %v1178 = vunpack.c.0.s8 %v1177
        %v1179 = vlaneseq
        %v1180 = vshrl.u32 %v1179, 7
        %v1181 = vsub.s32 %v1178, %v1180
        %v1182 = vrot.slane %v1121, %v1181
        %v1184 = vunpack.c.l.s4 1966171168
        %v1185 = vunpack.c.0.s8 %v1184
        %v1186 = vlaneseq
        %v1187 = vshrl.u32 %v1186, 7
        %v1188 = vsub.s32 %v1185, %v1187
        %v1189 = vrot.slane %v1175, %v1188
        %v1190 = vcombine.high %v1182, %v1182
        %v1191 = vcombine.high %v1189, %v1189
        %v1193 = vunpack.c.l.s4 1966171168
        %v1194 = vunpack.c.0.s8 %v1193
        %v1195 = vlaneseq
        %v1196 = vshrl.u32 %v1195, 7
        %v1197 = vsub.s32 %v1194, %v1196
        %v1198 = vrot.slane %v1182, %v1197
        %v1200 = vunpack.c.l.s4 1966171168
        %v1201 = vunpack.c.0.s8 %v1200
        %v1202 = vlaneseq
        %v1203 = vshrl.u32 %v1202, 7
        %v1204 = vsub.s32 %v1201, %v1203
        %v1205 = vrot.slane %v1189, %v1204
        %v1207 = vunpack.c.l.s4 1966171168
        %v1208 = vunpack.c.0.s8 %v1207
        %v1209 = vlaneseq
        %v1210 = vshrl.u32 %v1209, 7
        %v1211 = vsub.s32 %v1208, %v1210
        %v1212 = vrot.slane %v1190, %v1211
        %v1214 = vunpack.c.l.s4 1966171168
        %v1215 = vunpack.c.0.s8 %v1214
        %v1216 = vlaneseq
        %v1217 = vshrl.u32 %v1216, 7
        %v1218 = vsub.s32 %v1215, %v1217
        %v1219 = vrot.slane %v1191, %v1218
        %v1220 = vcombine.high %v1198, %v1198
        %v1221 = vcombine.high %v1205, %v1205
        %v1222 = vcombine.high %v1212, %v1212
        %v1223 = vcombine.high %v1219, %v1219
        %1240 = vst [vmem:[%s137 + $0x3] sm:$0x1] %v1149
        %1241 = vst [vmem:[%s137 + $0x7] sm:$0x1] %v1163
        %1242 = vst [vmem:[%s137 + $0xb] sm:$0x1] %v1171
        %1243 = vst [vmem:[%s137 + $0xf] sm:$0x1] %v1173
        %1244 = vst [vmem:[%s137 + $0x13] sm:$0x1] %v1156
        %1245 = vst [vmem:[%s137 + $0x17] sm:$0x1] %v1170
        %1246 = vst [vmem:[%s137 + $0x1b] sm:$0x1] %v1172
        %1247 = vst [vmem:[%s137 + $0x1f] sm:$0x1] %v1174
        %1248 = vst [vmem:[%s137 + $0x23] sm:$0x1] %v1198
        %1249 = vst [vmem:[%s137 + $0x27] sm:$0x1] %v1212
        %1250 = vst [vmem:[%s137 + $0x2b] sm:$0x1] %v1220
        %1251 = vst [vmem:[%s137 + $0x2f] sm:$0x1] %v1222
        %1252 = vst [vmem:[%s137 + $0x33] sm:$0x1] %v1205
        %1253 = vst [vmem:[%s137 + $0x37] sm:$0x1] %v1219
        %1254 = vst [vmem:[%s137 + $0x3b] sm:$0x1] %v1221
        %1255 = vst [vmem:[%s137 + $0x3f] sm:$0x1] %v1223
        %s1256 = sand.u32 %s71, 1
        %s1257 = scalar_lea.sflag [#allocation3], %s1256
        %s1258 = sand.u32 %s71, 1
        %s1259 = smul.addr %s1258, 64
        %s1260 = scalar_lea.vmem [#allocation2], %s1259
        // Predicated region
        $region29: #{tpu_custom_call.1} parent=27 // pred_check
          %p1261 = pneg %p81
        $region30: #{tpu_custom_call.1} parent=27 // pred_check_branch
          %1263 = sbr.rel (%p1261) target = $region32
        $region31: #{tpu_custom_call.1} parent=27 // pred_region
          %s1264 = smul.u32 16, %s16
          %s1266 = ssub.s32 1024, 1024
          %1267 = vsyncadd %s1257, %s1266
          %s1268 = smul.addr %s1264, 64
          %s1269 = scalar_lea.hbm %s2, %s1268
          %s1270 = sshll.u32 %s1260, 4
          %s1271 = int_to_ptr.vmem [resolvable:$true] %s1270
          %1276 = dma.vmem_to_hbm [thread:$0]  %s1271, 1024, %s1269, %s1257, 64, 64, 4
        $region32: #{tpu_custom_call.1} parent=27 // pred_fallthru
          _
      $region28: #{tpu_custom_call.1} parent=5 // pred_fallthru
        _
      %p1277 = scmp.le.s32.totalorder 2, %s11
      // Predicated region
      $region33: #{tpu_custom_call.1} parent=5 // pred_check
        %p1278 = pneg %p1277
      $region34: #{tpu_custom_call.1} parent=5 // pred_check_branch
        %1280 = sbr.rel (%p1278) target = $region36
      $region35: #{tpu_custom_call.1} parent=5 // pred_region
        %s1281 = ssub.s32 %s11, 2
        // Predicated region
        $region37: #{tpu_custom_call.1} parent=35 // pred_check
          %p1282 = pneg %p87
        $region38: #{tpu_custom_call.1} parent=35 // pred_check_branch
          %1284 = sbr.rel (%p1282) target = $region40
        $region39: #{tpu_custom_call.1} parent=35 // pred_region
          %s1285 = sand.u32 %s72, 1
          %s1286 = scalar_lea.sflag [#allocation3], %s1285
          %s1287 = sand.u32 %s72, 1
          %s1288 = smul.addr %s1287, 64
          %s1289 = scalar_lea.vmem [#allocation2], %s1288
          %1290 = dma.done %s1286, 1024
        $region40: #{tpu_custom_call.1} parent=35 // pred_fallthru
          _
      $region36: #{tpu_custom_call.1} parent=5 // pred_fallthru
        _
    $region6: #{tpu_custom_call.1} parent=1 // loop_footer
      %s15 = sadd.s32 1, %s11
    $region7: #{tpu_custom_call.1} parent=1 // loop_footer_branch
      %10 = sbr.rel target = $region3
    $region8: #{tpu_custom_call.1} parent=1 // loop_exit
      _
    %1291 = vsyncpa [#allocation3], 1
    %s1292 = scalar_lea.sflag [#allocation3], 1
    %1293 = vsyncpa %s1292, 1

</llo_original>
